<compile_context>
chip_gen: v7x
topology: tpu7x:2x2x1
jax: 0.10.0
libtpu: 0.0.40
codegen_flags: <defaults>
</compile_context>

<pallas_src>
import jax
import jax.numpy as jnp
from jax import lax
from jax.experimental import pallas as pl
from jax.experimental.pallas import tpu as pltpu

H1 = 256   # fcs1 width
H2 = 128   # fcs2 / fca1 / fc2 width


def qvalue_kernel(sa_ref, wsa_ref, bsa_ref,
                  ws2_ref, bs2_ref,
                  w2s_ref, w2a_ref, b2_ref,
                  w3t_ref, b3t_ref,
                  o_ref):
    # Fused first layer: [state | action] @ blockdiag(Ws1, Wa1)  -> [tb, 384] f32
    z = jnp.dot(sa_ref[...], wsa_ref[...], preferred_element_type=jnp.float32)
    z = jnp.maximum(z + bsa_ref[...], 0.0)
    s1 = z[:, :H1].astype(jnp.bfloat16)          # [tb, 256]  (lane-aligned slice)
    a1 = z[:, H1:].astype(jnp.bfloat16)          # [tb, 128]

    # State branch, layer 2.
    s2 = jnp.dot(s1, ws2_ref[...], preferred_element_type=jnp.float32)
    s2 = jnp.maximum(s2 + bs2_ref[...], 0.0).astype(jnp.bfloat16)      # [tb, 128]

    # fc2 over concat([s2, a1]) == s2 @ W2[:128] + a1 @ W2[128:]
    h = (jnp.dot(s2, w2s_ref[...], preferred_element_type=jnp.float32)
         + jnp.dot(a1, w2a_ref[...], preferred_element_type=jnp.float32)
         + b2_ref[...])
    h = jnp.maximum(h, 0.0).astype(jnp.bfloat16)                       # [tb, 128]

    # fc3, transposed so the store is lane-dense along the batch:
    #   (h @ W3)^T == dot_general(W3^T [out,128], h [tb,128], contract (1,1))
    q_t = lax.dot_general(w3t_ref[...], h, (((1,), (1,)), ((), ())),
                          preferred_element_type=jnp.float32)          # [out, tb]
    o_ref[...] = (q_t + b3t_ref[...]).astype(o_ref.dtype)


def _choose_batch_tile(batch):
    # Tiny batches: a single tile / grid step (latency-bound anyway).
    if batch <= 128:
        return batch
    # Otherwise: biggest 128-aligned tile that still yields >= 2 grid steps,
    # so ("parallel",) shards the batch across both v7x TensorCores and the
    # input/output DMA overlaps compute.  The wrapper zero-pads the batch to
    # grid * tile.
    for t in (2048, 1024, 512, 256, 128):
        if pl.cdiv(batch, t) >= 2:
            return t
    return 128


def qvalue_forward(state, action, params, *, batch_tile=None):
    """Fused Q(s, a).  state: [B, input_size], action: [B, action_dim] -> [B, out]."""
    k_wsa, k_bsa = params["k_wsa"], params["k_bsa"]
    k_ws2, k_bs2 = params["k_ws2"], params["k_bs2"]
    k_w2s, k_w2a, k_b2 = params["k_w2s"], params["k_w2a"], params["k_b2"]
    k_w3t, k_b3t = params["k_w3t"], params["k_b3t"]
    out_size = params["out_size"]

    B, I = state.shape
    Ba, Ad = action.shape
    assert B == Ba, "state/action batch mismatch"
    IA = I + Ad
    assert k_wsa.shape[0] == IA, "param/input feature mismatch"

    tb = int(batch_tile) if batch_tile is not None else _choose_batch_tile(B)
    grid_b = pl.cdiv(B, tb)
    if grid_b > 1 and tb % 128 != 0:
        raise ValueError("batch_tile must be a multiple of 128 when the batch "
                         "spans more than one grid step")
    Bp = grid_b * tb

    # One fused bf16 input stream; zero-pad the batch so every grid step is a
    # full tile (padded rows are sliced off after the kernel).
    sa = jnp.concatenate([state, action], axis=1).astype(jnp.bfloat16)
    if Bp != B:
        sa = jnp.pad(sa, ((0, Bp - B), (0, 0)))

    weight_bytes = (2 * (k_wsa.size + k_ws2.size + k_w2s.size + k_w2a.size + k_w3t.size)
                    + 4 * (k_bsa.size + k_bs2.size + k_b2.size + k_b3t.size))
    flops = 2 * Bp * (IA * (H1 + H2) + H1 * H2 + 2 * H2 * H2 + H2 * out_size)
    bytes_accessed = 2 * Bp * IA + 4 * out_size * Bp + weight_bytes

    q_t = pl.pallas_call(
        qvalue_kernel,
        out_shape=jax.ShapeDtypeStruct((out_size, Bp), jnp.float32),
        grid_spec=pltpu.PrefetchScalarGridSpec(
            num_scalar_prefetch=0,
            grid=(grid_b,),
            in_specs=[
                pl.BlockSpec((tb, IA), lambda i: (i, 0)),          # [state|action] tile
                pl.BlockSpec((IA, H1 + H2), lambda i: (0, 0)),     # Ws1 (+) Wa1 (resident)
                pl.BlockSpec((1, H1 + H2), lambda i: (0, 0)),      # [bs1 | ba1]
                pl.BlockSpec((H1, H2), lambda i: (0, 0)),          # Ws2
                pl.BlockSpec((1, H2), lambda i: (0, 0)),           # bs2
                pl.BlockSpec((H2, H2), lambda i: (0, 0)),          # W2[:128]
                pl.BlockSpec((H2, H2), lambda i: (0, 0)),          # W2[128:]
                pl.BlockSpec((1, H2), lambda i: (0, 0)),           # b2
                pl.BlockSpec((out_size, H2), lambda i: (0, 0)),    # W3^T
                pl.BlockSpec((out_size, 1), lambda i: (0, 0)),     # b3^T
            ],
            out_specs=pl.BlockSpec((out_size, tb), lambda i: (0, i)),
        ),
        compiler_params=pltpu.CompilerParams(
            dimension_semantics=("parallel",),
            vmem_limit_bytes=40 * 1024 * 1024,
        ),
        cost_estimate=pl.CostEstimate(
            flops=int(flops),
            transcendentals=0,
            bytes_accessed=int(bytes_accessed)),
    )(sa, k_wsa, k_bsa, k_ws2, k_bs2, k_w2s, k_w2a, k_b2, k_w3t, k_b3t)

    # [out, Bp] -> drop batch padding -> logical [B, out]
    return q_t[:, :B].T.astype(state.dtype)


def init_params(key, input_size, output_size, action_dim):
    """f32 master weights (nn.Linear U(-1/sqrt(fan_in),..) init) + bf16 kernel copies."""
    keys = jax.random.split(key, 10)

    def linear(kw, kb, fan_in, fan_out):
        bound = 1.0 / float(fan_in) ** 0.5
        w = jax.random.uniform(kw, (fan_in, fan_out), jnp.float32, -bound, bound)
        b = jax.random.uniform(kb, (1, fan_out), jnp.float32, -bound, bound)
        return w, b

    ws1, bs1 = linear(keys[0], keys[1], input_size, H1)    # fcs1
    ws2, bs2 = linear(keys[2], keys[3], H1, H2)            # fcs2
    wa1, ba1 = linear(keys[4], keys[5], action_dim, H2)    # fca1
    w2, b2 = linear(keys[6], keys[7], 2 * H2, H2)          # fc2
    w3, b3 = linear(keys[8], keys[9], H2, output_size)     # fc3

    # Kernel layout:
    #  * block-diagonal fused first-layer weight (exact: off-diagonal zeros)
    #  * W2 split into s2-half / a1-half (folds the concat away, exact)
    #  * W3 pre-transposed to [out, 128] for the lane-dense transposed store
    #  * weights in bf16, biases kept f32 (added to f32 accumulators)
    wsa = jnp.zeros((input_size + action_dim, H1 + H2), jnp.float32)
    wsa = wsa.at[:input_size, :H1].set(ws1)
    wsa = wsa.at[input_size:, H1:].set(wa1)
    bsa = jnp.concatenate([bs1, ba1], axis=1)              # [1, 384]

    return dict(
        # f32 masters (pure-JAX reference)
        ws1=ws1, bs1=bs1, ws2=ws2, bs2=bs2, wa1=wa1, ba1=ba1,
        w2=w2, b2=b2, w3=w3, b3=b3, out_size=output_size,
        # kernel-layout params
        k_wsa=wsa.astype(jnp.bfloat16), k_bsa=bsa,
        k_ws2=ws2.astype(jnp.bfloat16), k_bs2=bs2,
        k_w2s=w2[:H2].astype(jnp.bfloat16), k_w2a=w2[H2:].astype(jnp.bfloat16),
        k_b2=b2,
        k_w3t=w3.T.astype(jnp.bfloat16), k_b3t=b3.T,       # [out, 128], [out, 1]
    )


def qvalue_forward_ref(state, action, p):
    s1 = jnp.maximum(state @ p["ws1"] + p["bs1"], 0.0)
    s2 = jnp.maximum(s1 @ p["ws2"] + p["bs2"], 0.0)
    a1 = jnp.maximum(action @ p["wa1"] + p["ba1"], 0.0)
    x = jnp.concatenate([s2, a1], axis=1)
    h = jnp.maximum(x @ p["w2"] + p["b2"], 0.0)
    return h @ p["w3"] + p["b3"]


if __name__ == "__main__":
    # Small shapes consistent with the module: Q(state, action) -> [B, 1].
    input_size = 16   # state_dim
    action_dim = 4
    output_size = 1

    key = jax.random.PRNGKey(0)
    k_params, k_s, k_a = jax.random.split(key, 3)
    params = init_params(k_params, input_size, output_size, action_dim)

    # Demo batch (single tile, grid=(1,)).
    batch = 8
    state = jax.random.normal(k_s, (batch, input_size), jnp.float32)
    action = jax.random.normal(k_a, (batch, action_dim), jnp.float32)
    q = jax.block_until_ready(qvalue_forward(state, action, params))
    q_ref = qvalue_forward_ref(state, action, params)
    assert q.shape == (batch, output_size)
    # bf16 MXU operands (f32 accumulate) -> looser tolerance vs the f32 reference.
    assert jnp.allclose(q, q_ref, atol=5e-2, rtol=5e-2), "mismatch (small batch)"

    # Tiled + padded-batch path (tb=256, grid=(2,), batch padded 384 -> 512).
    batch2 = 384
    k_s2, k_a2 = jax.random.split(jax.random.PRNGKey(1))
    state2 = jax.random.normal(k_s2, (batch2, input_size), jnp.float32)
    action2 = jax.random.normal(k_a2, (batch2, action_dim), jnp.float32)
    q2 = jax.block_until_ready(qvalue_forward(state2, action2, params))
    q2_ref = qvalue_forward_ref(state2, action2, params)
    assert q2.shape == (batch2, output_size)
    assert jnp.allclose(q2, q2_ref, atol=5e-2, rtol=5e-2), "mismatch (tiled batch)"

    print("KERNEL_OK")
</pallas_src>

<mosaic_0001>
module attributes {stable_mosaic.version = 11 : i64} {
  func.func @qvalue_kernel(%arg0: i32, %arg1: memref<8x20xbf16, #tpu.memory_space<vmem>>, %arg2: memref<20x384xbf16, #tpu.memory_space<vmem>>, %arg3: memref<1x384xf32, #tpu.memory_space<vmem>>, %arg4: memref<256x128xbf16, #tpu.memory_space<vmem>>, %arg5: memref<1x128xf32, #tpu.memory_space<vmem>>, %arg6: memref<128x128xbf16, #tpu.memory_space<vmem>>, %arg7: memref<128x128xbf16, #tpu.memory_space<vmem>>, %arg8: memref<1x128xf32, #tpu.memory_space<vmem>>, %arg9: memref<1x128xbf16, #tpu.memory_space<vmem>>, %arg10: memref<1x1xf32, #tpu.memory_space<vmem>>, %arg11: memref<1x8xf32, #tpu.memory_space<vmem>>) attributes {dimension_semantics = [#tpu.dimension_semantics<parallel>], iteration_bounds = array<i64: 1>, scalar_prefetch = 0 : i64, scratch_operands = 0 : i64, tpu.core_type = #tpu.core_type<tc>, window_params = [{transform_indices = @transform_0, window_bounds = array<i64: 8, 20>}, {pipeline_mode = #tpu.pipeline_mode<synchronous>, transform_indices = @transform_1, window_bounds = array<i64: 20, 384>}, {pipeline_mode = #tpu.pipeline_mode<synchronous>, transform_indices = @transform_2, window_bounds = array<i64: 1, 384>}, {pipeline_mode = #tpu.pipeline_mode<synchronous>, transform_indices = @transform_3, window_bounds = array<i64: 256, 128>}, {pipeline_mode = #tpu.pipeline_mode<synchronous>, transform_indices = @transform_4, window_bounds = array<i64: 1, 128>}, {pipeline_mode = #tpu.pipeline_mode<synchronous>, transform_indices = @transform_5, window_bounds = array<i64: 128, 128>}, {pipeline_mode = #tpu.pipeline_mode<synchronous>, transform_indices = @transform_6, window_bounds = array<i64: 128, 128>}, {pipeline_mode = #tpu.pipeline_mode<synchronous>, transform_indices = @transform_7, window_bounds = array<i64: 1, 128>}, {pipeline_mode = #tpu.pipeline_mode<synchronous>, transform_indices = @transform_8, window_bounds = array<i64: 1, 128>}, {pipeline_mode = #tpu.pipeline_mode<synchronous>, transform_indices = @transform_9, window_bounds = array<i64: 1, 1>}, {transform_indices = @transform_10, window_bounds = array<i64: 1, 8>}]} {
    %c0 = arith.constant 0 : index
    %c0_0 = arith.constant 0 : index
    %0 = vector.load %arg1[%c0, %c0_0] : memref<8x20xbf16, #tpu.memory_space<vmem>>, vector<8x20xbf16>
    %c0_1 = arith.constant 0 : index
    %c0_2 = arith.constant 0 : index
    %1 = vector.load %arg2[%c0_1, %c0_2] : memref<20x384xbf16, #tpu.memory_space<vmem>>, vector<20x384xbf16>
    %cst = arith.constant dense<0.000000e+00> : vector<8x384xf32>
    %2 = tpu.matmul %0, %1, %cst {dimension_numbers = #tpu.dot_dimension_numbers<[1], [0], [0], [1], [0, 0, 1, 1], [], []>} : vector<8x20xbf16>, vector<20x384xbf16>, vector<8x384xf32> -> vector<8x384xf32>
    %c0_3 = arith.constant 0 : index
    %c0_4 = arith.constant 0 : index
    %3 = vector.load %arg3[%c0_3, %c0_4] : memref<1x384xf32, #tpu.memory_space<vmem>>, vector<1x384xf32>
    %4 = vector.broadcast %3 : vector<1x384xf32> to vector<8x384xf32>
    %5 = arith.addf %2, %4 : vector<8x384xf32>
    %cst_5 = arith.constant 0.000000e+00 : f32
    %6 = vector.broadcast %cst_5 : f32 to vector<8x384xf32>
    %7 = arith.maximumf %5, %6 : vector<8x384xf32>
    %8 = vector.extract_strided_slice %7 {offsets = [0, 0], sizes = [8, 256], strides = [1, 1]} : vector<8x384xf32> to vector<8x256xf32>
    %9 = arith.truncf %8 : vector<8x256xf32> to vector<8x256xbf16>
    %10 = vector.extract_strided_slice %7 {offsets = [0, 256], sizes = [8, 128], strides = [1, 1]} : vector<8x384xf32> to vector<8x128xf32>
    %11 = arith.truncf %10 : vector<8x128xf32> to vector<8x128xbf16>
    %c0_6 = arith.constant 0 : index
    %c0_7 = arith.constant 0 : index
    %12 = vector.load %arg4[%c0_6, %c0_7] : memref<256x128xbf16, #tpu.memory_space<vmem>>, vector<256x128xbf16>
    %cst_8 = arith.constant dense<0.000000e+00> : vector<8x128xf32>
    %13 = tpu.matmul %9, %12, %cst_8 {dimension_numbers = #tpu.dot_dimension_numbers<[1], [0], [0], [1], [0, 0, 1, 1], [], []>} : vector<8x256xbf16>, vector<256x128xbf16>, vector<8x128xf32> -> vector<8x128xf32>
    %c0_9 = arith.constant 0 : index
    %c0_10 = arith.constant 0 : index
    %14 = vector.load %arg5[%c0_9, %c0_10] : memref<1x128xf32, #tpu.memory_space<vmem>>, vector<1x128xf32>
    %15 = vector.broadcast %14 : vector<1x128xf32> to vector<8x128xf32>
    %16 = arith.addf %13, %15 : vector<8x128xf32>
    %cst_11 = arith.constant 0.000000e+00 : f32
    %17 = vector.broadcast %cst_11 : f32 to vector<8x128xf32>
    %18 = arith.maximumf %16, %17 : vector<8x128xf32>
    %19 = arith.truncf %18 : vector<8x128xf32> to vector<8x128xbf16>
    %c0_12 = arith.constant 0 : index
    %c0_13 = arith.constant 0 : index
    %20 = vector.load %arg6[%c0_12, %c0_13] : memref<128x128xbf16, #tpu.memory_space<vmem>>, vector<128x128xbf16>
    %cst_14 = arith.constant dense<0.000000e+00> : vector<8x128xf32>
    %21 = tpu.matmul %19, %20, %cst_14 {dimension_numbers = #tpu.dot_dimension_numbers<[1], [0], [0], [1], [0, 0, 1, 1], [], []>} : vector<8x128xbf16>, vector<128x128xbf16>, vector<8x128xf32> -> vector<8x128xf32>
    %c0_15 = arith.constant 0 : index
    %c0_16 = arith.constant 0 : index
    %22 = vector.load %arg7[%c0_15, %c0_16] : memref<128x128xbf16, #tpu.memory_space<vmem>>, vector<128x128xbf16>
    %cst_17 = arith.constant dense<0.000000e+00> : vector<8x128xf32>
    %23 = tpu.matmul %11, %22, %cst_17 {dimension_numbers = #tpu.dot_dimension_numbers<[1], [0], [0], [1], [0, 0, 1, 1], [], []>} : vector<8x128xbf16>, vector<128x128xbf16>, vector<8x128xf32> -> vector<8x128xf32>
    %24 = arith.addf %21, %23 : vector<8x128xf32>
    %c0_18 = arith.constant 0 : index
    %c0_19 = arith.constant 0 : index
    %25 = vector.load %arg8[%c0_18, %c0_19] : memref<1x128xf32, #tpu.memory_space<vmem>>, vector<1x128xf32>
    %26 = vector.broadcast %25 : vector<1x128xf32> to vector<8x128xf32>
    %27 = arith.addf %24, %26 : vector<8x128xf32>
    %cst_20 = arith.constant 0.000000e+00 : f32
    %28 = vector.broadcast %cst_20 : f32 to vector<8x128xf32>
    %29 = arith.maximumf %27, %28 : vector<8x128xf32>
    %30 = arith.truncf %29 : vector<8x128xf32> to vector<8x128xbf16>
    %c0_21 = arith.constant 0 : index
    %c0_22 = arith.constant 0 : index
    %31 = vector.load %arg9[%c0_21, %c0_22] : memref<1x128xbf16, #tpu.memory_space<vmem>>, vector<1x128xbf16>
    %cst_23 = arith.constant dense<0.000000e+00> : vector<1x8xf32>
    %32 = tpu.matmul %31, %30, %cst_23 {dimension_numbers = #tpu.dot_dimension_numbers<[1], [1], [0], [0], [0, 0, 1, 0], [], []>} : vector<1x128xbf16>, vector<8x128xbf16>, vector<1x8xf32> -> vector<1x8xf32>
    %c0_24 = arith.constant 0 : index
    %c0_25 = arith.constant 0 : index
    %33 = vector.load %arg10[%c0_24, %c0_25] : memref<1x1xf32, #tpu.memory_space<vmem>>, vector<1x1xf32>
    %34 = vector.broadcast %33 : vector<1x1xf32> to vector<1x8xf32>
    %35 = arith.addf %32, %34 : vector<1x8xf32>
    %c0_26 = arith.constant 0 : index
    %c0_27 = arith.constant 0 : index
    %36 = vector.load %arg11[%c0_26, %c0_27] : memref<1x8xf32, #tpu.memory_space<vmem>>, vector<1x8xf32>
    tpu.vector_store %arg11[%c0_26, %c0_27], %35 {strides = array<i32>} : memref<1x8xf32, #tpu.memory_space<vmem>>, vector<1x8xf32>,
    return
  }
  func.func @transform_0(%arg0: i32) -> (i32, i32) {
    %c0_i32 = arith.constant 0 : i32
    %c0_i32_0 = arith.constant 0 : i32
    return %arg0, %c0_i32 : i32, i32
  }
  func.func @transform_1(%arg0: i32) -> (i32, i32) {
    %c0_i32 = arith.constant 0 : i32
    %c0_i32_0 = arith.constant 0 : i32
    %c0_i32_1 = arith.constant 0 : i32
    return %c0_i32, %c0_i32_0 : i32, i32
  }
  func.func @transform_2(%arg0: i32) -> (i32, i32) {
    %c0_i32 = arith.constant 0 : i32
    %c0_i32_0 = arith.constant 0 : i32
    %c0_i32_1 = arith.constant 0 : i32
    return %c0_i32, %c0_i32_0 : i32, i32
  }
  func.func @transform_3(%arg0: i32) -> (i32, i32) {
    %c0_i32 = arith.constant 0 : i32
    %c0_i32_0 = arith.constant 0 : i32
    %c0_i32_1 = arith.constant 0 : i32
    return %c0_i32, %c0_i32_0 : i32, i32
  }
  func.func @transform_4(%arg0: i32) -> (i32, i32) {
    %c0_i32 = arith.constant 0 : i32
    %c0_i32_0 = arith.constant 0 : i32
    %c0_i32_1 = arith.constant 0 : i32
    return %c0_i32, %c0_i32_0 : i32, i32
  }
  func.func @transform_5(%arg0: i32) -> (i32, i32) {
    %c0_i32 = arith.constant 0 : i32
    %c0_i32_0 = arith.constant 0 : i32
    %c0_i32_1 = arith.constant 0 : i32
    return %c0_i32, %c0_i32_0 : i32, i32
  }
  func.func @transform_6(%arg0: i32) -> (i32, i32) {
    %c0_i32 = arith.constant 0 : i32
    %c0_i32_0 = arith.constant 0 : i32
    %c0_i32_1 = arith.constant 0 : i32
    return %c0_i32, %c0_i32_0 : i32, i32
  }
  func.func @transform_7(%arg0: i32) -> (i32, i32) {
    %c0_i32 = arith.constant 0 : i32
    %c0_i32_0 = arith.constant 0 : i32
    %c0_i32_1 = arith.constant 0 : i32
    return %c0_i32, %c0_i32_0 : i32, i32
  }
  func.func @transform_8(%arg0: i32) -> (i32, i32) {
    %c0_i32 = arith.constant 0 : i32
    %c0_i32_0 = arith.constant 0 : i32
    %c0_i32_1 = arith.constant 0 : i32
    return %c0_i32, %c0_i32_0 : i32, i32
  }
  func.func @transform_9(%arg0: i32) -> (i32, i32) {
    %c0_i32 = arith.constant 0 : i32
    %c0_i32_0 = arith.constant 0 : i32
    %c0_i32_1 = arith.constant 0 : i32
    return %c0_i32, %c0_i32_0 : i32, i32
  }
  func.func @transform_10(%arg0: i32) -> (i32, i32) {
    %c0_i32 = arith.constant 0 : i32
    %c0_i32_0 = arith.constant 0 : i32
    return %c0_i32, %arg0 : i32, i32
  }
}

</mosaic_0001>

<llo_original>
// kernel: tpu_custom_call.1
$region0: #{tpu_custom_call.1}
  #allocation0 [shape = 'u32[]', space=smem, size = 0x4, offset = 0x4, fixed_abs, tag = 'smem constant byte address 0x4 - core index']
  #allocation1 [shape = 'u32[144,128]{1,0:T(1,128)}', space=vmem, size = 0x12000, scoped, tag = 'internal scratch']
  #allocation2 [shape = 'f32[1,1]{1,0:T(1,128)S(1)}', space=vmem, size = 0x200, scoped, tag = 'scoped memory for tpu_custom_call.1']
  %s0 = inlined_call_operand.hbm [shape: bf16[8,20], index: 0, kind: input, shape index: {}]
  %s1 = inlined_call_operand.hbm [shape: bf16[20,384], index: 1, kind: input, shape index: {}]
  %s2 = inlined_call_operand.vmem [shape: f32[1,384], index: 2, kind: input, shape index: {}]
  %s3 = inlined_call_operand.hbm [shape: bf16[256,128], index: 3, kind: input, shape index: {}]
  %s4 = inlined_call_operand.vmem [shape: f32[1,128], index: 4, kind: input, shape index: {}]
  %s5 = inlined_call_operand.hbm [shape: bf16[128,128], index: 5, kind: input, shape index: {}]
  %s6 = inlined_call_operand.hbm [shape: bf16[128,128], index: 6, kind: input, shape index: {}]
  %s7 = inlined_call_operand.vmem [shape: f32[1,128], index: 7, kind: input, shape index: {}]
  %s8 = inlined_call_operand.vmem [shape: bf16[1,128], index: 8, kind: input, shape index: {}]
  %s9 = inlined_call_operand.<no memory space> [shape: f32[1,1], index: 9, kind: input, shape index: {}]
  %s10 = inlined_call_operand.hbm [shape: f32[1,8], index: 10, kind: output, shape index: {}]
  %s11 = sld [smem:[#allocation0]]
  $region70: #{tpu_custom_call.1} parent=0
    _
  %s13 = ssub.s32 1, %s11
  %s14 = scalar_select 0, %s13, %s11
  %v15 = vstv %s9
  %16 = vst [vmem:[#allocation2] sm:$0x1] %v15
  $region1: #{tpu_custom_call.1} parent=0
    #allocation3 [shape = 'u8[2048]{0}', space=vmem, size = 0x800, scoped, tag = 'input window, operand 0, single buffered']
    #allocation4 [shape = 's32[1]{0}', space=sflag, size = 0x4, scoped, tag = 'scoped memory for tpu_custom_call.1']
    #allocation5 [shape = 's32[1]{0}', space=sflag, size = 0x4, scoped, tag = 'scoped memory for tpu_custom_call.1']
    #allocation6 [shape = 'u8[18432]{0}', space=vmem, size = 0x4800, scoped, tag = 'input window, operand 1, single buffered']
    #allocation7 [shape = 's32[1]{0}', space=sflag, size = 0x4, scoped, tag = 'scoped memory for tpu_custom_call.1']
    #allocation8 [shape = 'u8[65536]{0}', space=vmem, size = 0x10000, scoped, tag = 'input window, operand 3, single buffered']
    #allocation9 [shape = 'u8[32768]{0}', space=vmem, size = 0x8000, scoped, tag = 'input window, operand 5, single buffered']
    #allocation10 [shape = 's32[1]{0}', space=sflag, size = 0x4, scoped, tag = 'scoped memory for tpu_custom_call.1']
    #allocation11 [shape = 'u8[32768]{0}', space=vmem, size = 0x8000, scoped, tag = 'input window, operand 6, single buffered']
    #allocation12 [shape = 'u8[512]{0}', space=vmem, size = 0x400, scoped, tag = 'output window, operand 0, single buffered']
    %17 = vsyncpa [#allocation4], 0
    %18 = vsyncpa [#allocation7], 0
    %19 = vsyncpa [#allocation10], 0
    %20 = vsyncpa [#allocation5], 0
    // Predicated region
    $region2: #{tpu_custom_call.1} parent=1 // pred_check
      _
    $region3: #{tpu_custom_call.1} parent=1 // pred_check_branch
      %22 = sbr.rel (0) target = $region5
    $region4: #{tpu_custom_call.1} parent=1 // pred_region
      %s24 = ssub.s32 64, 64
      %25 = vsyncadd [#allocation4], %s24
      %s27 = sshll.u32 [#allocation3], 4
      %s28 = int_to_ptr.vmem [resolvable:$true] %s27
      %30 = dma.hbm_to_vmem [thread:$0]  %s0, 64, %s28, [#allocation4]
    $region5: #{tpu_custom_call.1} parent=1 // pred_fallthru
      _
    // Predicated region
    $region6: #{tpu_custom_call.1} parent=1 // pred_check
      _
    $region7: #{tpu_custom_call.1} parent=1 // pred_check_branch
      %32 = sbr.rel (0) target = $region9
    $region8: #{tpu_custom_call.1} parent=1 // pred_region
      %s34 = ssub.s32 576, 576
      %35 = vsyncadd [#allocation7], %s34
      %s36 = sshll.u32 [#allocation6], 4
      %s37 = int_to_ptr.vmem [resolvable:$true] %s36
      %42 = dma.hbm_to_vmem [thread:$0]  %s1, 576, %s37, [#allocation7], 192, 192, 12
    $region9: #{tpu_custom_call.1} parent=1 // pred_fallthru
      _
    // Predicated region
    $region10: #{tpu_custom_call.1} parent=1 // pred_check
      _
    $region11: #{tpu_custom_call.1} parent=1 // pred_check_branch
      %44 = sbr.rel (0) target = $region13
    $region12: #{tpu_custom_call.1} parent=1 // pred_region
      _
    $region13: #{tpu_custom_call.1} parent=1 // pred_fallthru
      _
    // Predicated region
    $region14: #{tpu_custom_call.1} parent=1 // pred_check
      _
    $region15: #{tpu_custom_call.1} parent=1 // pred_check_branch
      %46 = sbr.rel (0) target = $region17
    $region16: #{tpu_custom_call.1} parent=1 // pred_region
      %s48 = ssub.s32 2048, 2048
      %49 = vsyncadd [#allocation7], %s48
      %s50 = sshll.u32 [#allocation8], 4
      %s51 = int_to_ptr.vmem [resolvable:$true] %s50
      %56 = dma.hbm_to_vmem [thread:$0]  %s3, 2048, %s51, [#allocation7], 64, 64, 4
    $region17: #{tpu_custom_call.1} parent=1 // pred_fallthru
      _
    // Predicated region
    $region18: #{tpu_custom_call.1} parent=1 // pred_check
      _
    $region19: #{tpu_custom_call.1} parent=1 // pred_check_branch
      %58 = sbr.rel (0) target = $region21
    $region20: #{tpu_custom_call.1} parent=1 // pred_region
      _
    $region21: #{tpu_custom_call.1} parent=1 // pred_fallthru
      _
    // Predicated region
    $region22: #{tpu_custom_call.1} parent=1 // pred_check
      _
    $region23: #{tpu_custom_call.1} parent=1 // pred_check_branch
      %60 = sbr.rel (0) target = $region25
    $region24: #{tpu_custom_call.1} parent=1 // pred_region
      %s62 = ssub.s32 1024, 1024
      %63 = vsyncadd [#allocation10], %s62
      %s64 = sshll.u32 [#allocation9], 4
      %s65 = int_to_ptr.vmem [resolvable:$true] %s64
      %70 = dma.hbm_to_vmem [thread:$0]  %s5, 1024, %s65, [#allocation10], 64, 64, 4
    $region25: #{tpu_custom_call.1} parent=1 // pred_fallthru
      _
    // Predicated region
    $region26: #{tpu_custom_call.1} parent=1 // pred_check
      _
    $region27: #{tpu_custom_call.1} parent=1 // pred_check_branch
      %72 = sbr.rel (0) target = $region29
    $region28: #{tpu_custom_call.1} parent=1 // pred_region
      %s74 = ssub.s32 1024, 1024
      %75 = vsyncadd [#allocation10], %s74
      %s76 = sshll.u32 [#allocation11], 4
      %s77 = int_to_ptr.vmem [resolvable:$true] %s76
      %82 = dma.hbm_to_vmem [thread:$0]  %s6, 1024, %s77, [#allocation10], 64, 64, 4
    $region29: #{tpu_custom_call.1} parent=1 // pred_fallthru
      _
    // Predicated region
    $region30: #{tpu_custom_call.1} parent=1 // pred_check
      _
    $region31: #{tpu_custom_call.1} parent=1 // pred_check_branch
      %84 = sbr.rel (0) target = $region33
    $region32: #{tpu_custom_call.1} parent=1 // pred_region
      _
    $region33: #{tpu_custom_call.1} parent=1 // pred_fallthru
      _
    // Predicated region
    $region34: #{tpu_custom_call.1} parent=1 // pred_check
      _
    $region35: #{tpu_custom_call.1} parent=1 // pred_check_branch
      %86 = sbr.rel (0) target = $region37
    $region36: #{tpu_custom_call.1} parent=1 // pred_region
      _
    $region37: #{tpu_custom_call.1} parent=1 // pred_fallthru
      _
    // Predicated region
    $region38: #{tpu_custom_call.1} parent=1 // pred_check
      _
    $region39: #{tpu_custom_call.1} parent=1 // pred_check_branch
      %88 = sbr.rel (0) target = $region41
    $region40: #{tpu_custom_call.1} parent=1 // pred_region
      _
    $region41: #{tpu_custom_call.1} parent=1 // pred_fallthru
      _
    // Predicated region
    $region42: #{tpu_custom_call.1} parent=1 // pred_check
      _
    $region43: #{tpu_custom_call.1} parent=1 // pred_check_branch
      %90 = sbr.rel (0) target = $region45
    $region44: #{tpu_custom_call.1} parent=1 // pred_region
      %91 = dma.done [#allocation4], 64
    $region45: #{tpu_custom_call.1} parent=1 // pred_fallthru
      _
    // Predicated region
    $region46: #{tpu_custom_call.1} parent=1 // pred_check
      _
    $region47: #{tpu_custom_call.1} parent=1 // pred_check_branch
      %93 = sbr.rel (0) target = $region49
    $region48: #{tpu_custom_call.1} parent=1 // pred_region
      %94 = dma.done [#allocation7], 576
    $region49: #{tpu_custom_call.1} parent=1 // pred_fallthru
      _
    // Predicated region
    $region50: #{tpu_custom_call.1} parent=1 // pred_check
      _
    $region51: #{tpu_custom_call.1} parent=1 // pred_check_branch
      %96 = sbr.rel (0) target = $region53
    $region52: #{tpu_custom_call.1} parent=1 // pred_region
      %97 = dma.done [#allocation7], 2048
    $region53: #{tpu_custom_call.1} parent=1 // pred_fallthru
      _
    // Predicated region
    $region54: #{tpu_custom_call.1} parent=1 // pred_check
      _
    $region55: #{tpu_custom_call.1} parent=1 // pred_check_branch
      %99 = sbr.rel (0) target = $region57
    $region56: #{tpu_custom_call.1} parent=1 // pred_region
      %100 = dma.done [#allocation10], 1024
    $region57: #{tpu_custom_call.1} parent=1 // pred_fallthru
      _
    // Predicated region
    $region58: #{tpu_custom_call.1} parent=1 // pred_check
      _
    $region59: #{tpu_custom_call.1} parent=1 // pred_check_branch
      %102 = sbr.rel (0) target = $region61
    $region60: #{tpu_custom_call.1} parent=1 // pred_region
      %103 = dma.done [#allocation10], 1024
    $region61: #{tpu_custom_call.1} parent=1 // pred_fallthru
      _
    %v105 = vld [vmem:[#allocation3] sm:$0xf]
    %v106 = vld [vmem:[#allocation6] sm:$0xff]
    %v107 = vld [vmem:[#allocation6 + $0x8] sm:$0xf]
    %v108 = vld [vmem:[#allocation6 + $0xc] sm:$0xff]
    %v109 = vld [vmem:[#allocation6 + $0x14] sm:$0xf]
    %v110 = vld [vmem:[#allocation6 + $0x18] sm:$0x33]
    %v111 = vld [vmem:[#allocation6 + $0x20] sm:$0x3]
    %v112 = vld [vmem:[%s2] sm:$0x7]
    %v114 = vlaneseq
    %v115 = vshrl.u32 %v114, 7
    %v116 = vsub.s32 0, %v115
    %v117 = vrot.slane %v112, %v116
    %v118 = vlaneseq
    %v119 = vshrl.u32 %v118, 7
    %v120 = vsub.s32 1, %v119
    %v121 = vrot.slane %v112, %v120
    %v122 = vlaneseq
    %v123 = vshrl.u32 %v122, 7
    %v124 = vsub.s32 2, %v123
    %v125 = vrot.slane %v112, %v124
    %v135 = vunpack.c.l.b16 %v106
    %v136 = vunpack.c.h.b16 %v106
    %v137 = vunpack.c.l.b16 %v107
    %v138 = vunpack.c.l.b16 %v108
    %v139 = vunpack.c.h.b16 %v108
    %v140 = vunpack.c.l.b16 %v109
    %v141 = vunpack.c.l.b16 %v110
    %v142 = vunpack.c.h.b16 %v110
    %v143 = vunpack.c.l.b16 %v111
    %v144 = vpack.c.b16 %v138, %v135
    %v145 = vpack.c.b16 %v139, %v136
    %v146 = vpack.c.b16 %v140, %v137
    %v147 = vpack.c.b16 %v141, %v141
    %v148 = vpack.c.b16 %v142, %v142
    %v149 = vpack.c.b16 %v143, %v143
    %vm153 = vcmask 162816
    %v155 = vsel %vm153, %v105, 0
    %vm157 = vcmask 1041408
    %v159 = vsel %vm157, %v147, 0
    %v162 = vsel %vm157, %v148, 0
    %v165 = vsel %vm157, %v149, 0
    %167 = vmatprep.subr.bf16.mxu0 %v145
    %168 = vmatpush1.bf16.msra.mxu0 %v144
    %169 = vmatprep.subr.bf16.mxu0 %v162
    %170 = vmatpush1.bf16.msra.mxu0 %v159
    %171 = vmatprep.subr.bf16.mxu0 0
    %172 = vmatpush1.bf16.msra.mxu0 0
    %173 = vmatprep.subr.bf16.mxu0 0
    %174 = vmatpush1.bf16.msra.mxu0 0
    %175 = vmatprep.subr.bf16.mxu0 0
    %176 = vmatpush1.bf16.msra.mxu0 0
    %177 = vmatprep.subr.bf16.mxu0 0
    %178 = vmatpush1.bf16.msra.mxu0 0
    %179 = vmatprep.subr.bf16.mxu0 0
    %180 = vmatpush1.bf16.msra.mxu0 0
    %181 = vmatprep.subr.bf16.mxu0 0
    %182 = vmatpush1.bf16.msra.mxu0 0
    %183 = vmatprep.subr.bf16.mxu0 0
    %184 = vmatpush1.bf16.msra.mxu0 0
    %185 = vmatprep.subr.bf16.mxu0 0
    %186 = vmatpush1.bf16.msra.mxu0 0
    %187 = vmatprep.subr.bf16.mxu0 0
    %188 = vmatpush1.bf16.msra.mxu0 0
    %189 = vmatprep.subr.bf16.mxu0 0
    %190 = vmatpush1.bf16.msra.mxu0 0
    %191 = vmatprep.subr.bf16.mxu0 0
    %192 = vmatpush1.bf16.msra.mxu0 0
    %193 = vmatprep.subr.bf16.mxu0 0
    %194 = vmatpush1.bf16.msra.mxu0 0
    %195 = vmatprep.subr.bf16.mxu0 0
    %196 = vmatpush1.bf16.msra.mxu0 0
    %197 = vmatprep.subr.bf16.mxu0 0
    %198 = vmatpush1.bf16.msra.mxu0 0
    %199 = vmatprep.mubr.bf16.mxu0 0
    %200 = vmatmul.mubr.bf16.gmra.mrb[0].mxu0 %v155
    %v201 = vpop.f32.mrb[0].mxu0
    %v202 = vadd.f32 %v117, %v201
    %v203 = vpop.f32.mrb[0].mxu0
    %v204 = vadd.f32 %v121, %v203
    %v205 = vpop.f32.mrb[0].mxu0
    %v206 = vpop.f32.mrb[0].mxu0
    %207 = vdwg.mxu0
    %208 = vmatprep.subr.bf16.mxu0 0
    %209 = vmatpush1.bf16.msra.mxu0 %v146
    %210 = vmatprep.subr.bf16.mxu0 0
    %211 = vmatpush1.bf16.msra.mxu0 %v165
    %212 = vmatprep.subr.bf16.mxu0 0
    %213 = vmatpush1.bf16.msra.mxu0 0
    %214 = vmatprep.subr.bf16.mxu0 0
    %215 = vmatpush1.bf16.msra.mxu0 0
    %216 = vmatprep.subr.bf16.mxu0 0
    %217 = vmatpush1.bf16.msra.mxu0 0
    %218 = vmatprep.subr.bf16.mxu0 0
    %219 = vmatpush1.bf16.msra.mxu0 0
    %220 = vmatprep.subr.bf16.mxu0 0
    %221 = vmatpush1.bf16.msra.mxu0 0
    %222 = vmatprep.subr.bf16.mxu0 0
    %223 = vmatpush1.bf16.msra.mxu0 0
    %224 = vmatprep.subr.bf16.mxu0 0
    %225 = vmatpush1.bf16.msra.mxu0 0
    %226 = vmatprep.subr.bf16.mxu0 0
    %227 = vmatpush1.bf16.msra.mxu0 0
    %228 = vmatprep.subr.bf16.mxu0 0
    %229 = vmatpush1.bf16.msra.mxu0 0
    %230 = vmatprep.subr.bf16.mxu0 0
    %231 = vmatpush1.bf16.msra.mxu0 0
    %232 = vmatprep.subr.bf16.mxu0 0
    %233 = vmatpush1.bf16.msra.mxu0 0
    %234 = vmatprep.subr.bf16.mxu0 0
    %235 = vmatpush1.bf16.msra.mxu0 0
    %236 = vmatprep.subr.bf16.mxu0 0
    %237 = vmatpush1.bf16.msra.mxu0 0
    %238 = vmatprep.subr.bf16.mxu0 0
    %239 = vmatpush1.bf16.msra.mxu0 0
    %240 = vmatprep.mubr.bf16.mxu0 0
    %241 = vmatmul.mubr.bf16.gmra.mrb[0].mxu0 %v155
    %v242 = vpop.f32.mrb[0].mxu0
    %v243 = vadd.f32 %v125, %v242
    %v244 = vpop.f32.mrb[0].mxu0
    %v245 = vpop.f32.mrb[0].mxu0
    %v246 = vpop.f32.mrb[0].mxu0
    %247 = vdwg.mxu0
    %v248 = vmax.f32 %v202, 0.0
    %v249 = vmax.f32 %v204, 0.0
    %v250 = vmax.f32 %v243, 0.0
    %v251 = vpack.c.bf16 %v248, %v248
    %v252 = vpack.c.bf16 %v249, %v249
    %v253 = vpack.c.bf16 %v250, %v250
    %v254 = vld [vmem:[#allocation8] sm:$0xf]
    %v255 = vld [vmem:[#allocation8 + $0x4] sm:$0xf]
    %v256 = vld [vmem:[#allocation8 + $0x8] sm:$0xf]
    %v257 = vld [vmem:[#allocation8 + $0xc] sm:$0xf]
    %v258 = vld [vmem:[#allocation8 + $0x10] sm:$0xf]
    %v259 = vld [vmem:[#allocation8 + $0x14] sm:$0xf]
    %v260 = vld [vmem:[#allocation8 + $0x18] sm:$0xf]
    %v261 = vld [vmem:[#allocation8 + $0x1c] sm:$0xf]
    %v262 = vld [vmem:[#allocation8 + $0x20] sm:$0xf]
    %v263 = vld [vmem:[#allocation8 + $0x24] sm:$0xf]
    %v264 = vld [vmem:[#allocation8 + $0x28] sm:$0xf]
    %v265 = vld [vmem:[#allocation8 + $0x2c] sm:$0xf]
    %v266 = vld [vmem:[#allocation8 + $0x30] sm:$0xf]
    %v267 = vld [vmem:[#allocation8 + $0x34] sm:$0xf]
    %v268 = vld [vmem:[#allocation8 + $0x38] sm:$0xf]
    %v269 = vld [vmem:[#allocation8 + $0x3c] sm:$0xf]
    %v270 = vld [vmem:[#allocation8 + $0x40] sm:$0xf]
    %v271 = vld [vmem:[#allocation8 + $0x44] sm:$0xf]
    %v272 = vld [vmem:[#allocation8 + $0x48] sm:$0xf]
    %v273 = vld [vmem:[#allocation8 + $0x4c] sm:$0xf]
    %v274 = vld [vmem:[#allocation8 + $0x50] sm:$0xf]
    %v275 = vld [vmem:[#allocation8 + $0x54] sm:$0xf]
    %v276 = vld [vmem:[#allocation8 + $0x58] sm:$0xf]
    %v277 = vld [vmem:[#allocation8 + $0x5c] sm:$0xf]
    %v278 = vld [vmem:[#allocation8 + $0x60] sm:$0xf]
    %v279 = vld [vmem:[#allocation8 + $0x64] sm:$0xf]
    %v280 = vld [vmem:[#allocation8 + $0x68] sm:$0xf]
    %v281 = vld [vmem:[#allocation8 + $0x6c] sm:$0xf]
    %v282 = vld [vmem:[#allocation8 + $0x70] sm:$0xf]
    %v283 = vld [vmem:[#allocation8 + $0x74] sm:$0xf]
    %v284 = vld [vmem:[#allocation8 + $0x78] sm:$0xf]
    %v285 = vld [vmem:[#allocation8 + $0x7c] sm:$0xf]
    %v286 = vld [vmem:[%s4] sm:$0x1]
    %v288 = vlaneseq
    %v289 = vshrl.u32 %v288, 7
    %v290 = vsub.s32 0, %v289
    %v291 = vrot.slane %v286, %v290
    %v325 = vunpack.c.l.b16 %v254
    %v326 = vunpack.c.l.b16 %v255
    %v327 = vunpack.c.l.b16 %v256
    %v328 = vunpack.c.l.b16 %v257
    %v329 = vunpack.c.l.b16 %v258
    %v330 = vunpack.c.l.b16 %v259
    %v331 = vunpack.c.l.b16 %v260
    %v332 = vunpack.c.l.b16 %v261
    %v333 = vunpack.c.l.b16 %v262
    %v334 = vunpack.c.l.b16 %v263
    %v335 = vunpack.c.l.b16 %v264
    %v336 = vunpack.c.l.b16 %v265
    %v337 = vunpack.c.l.b16 %v266
    %v338 = vunpack.c.l.b16 %v267
    %v339 = vunpack.c.l.b16 %v268
    %v340 = vunpack.c.l.b16 %v269
    %v341 = vunpack.c.l.b16 %v270
    %v342 = vunpack.c.l.b16 %v271
    %v343 = vunpack.c.l.b16 %v272
    %v344 = vunpack.c.l.b16 %v273
    %v345 = vunpack.c.l.b16 %v274
    %v346 = vunpack.c.l.b16 %v275
    %v347 = vunpack.c.l.b16 %v276
    %v348 = vunpack.c.l.b16 %v277
    %v349 = vunpack.c.l.b16 %v278
    %v350 = vunpack.c.l.b16 %v279
    %v351 = vunpack.c.l.b16 %v280
    %v352 = vunpack.c.l.b16 %v281
    %v353 = vunpack.c.l.b16 %v282
    %v354 = vunpack.c.l.b16 %v283
    %v355 = vunpack.c.l.b16 %v284
    %v356 = vunpack.c.l.b16 %v285
    %v357 = vpack.c.b16 %v326, %v325
    %v358 = vpack.c.b16 %v328, %v327
    %v359 = vpack.c.b16 %v330, %v329
    %v360 = vpack.c.b16 %v332, %v331
    %v361 = vpack.c.b16 %v334, %v333
    %v362 = vpack.c.b16 %v336, %v335
    %v363 = vpack.c.b16 %v338, %v337
    %v364 = vpack.c.b16 %v340, %v339
    %v365 = vpack.c.b16 %v342, %v341
    %v366 = vpack.c.b16 %v344, %v343
    %v367 = vpack.c.b16 %v346, %v345
    %v368 = vpack.c.b16 %v348, %v347
    %v369 = vpack.c.b16 %v350, %v349
    %v370 = vpack.c.b16 %v352, %v351
    %v371 = vpack.c.b16 %v354, %v353
    %v372 = vpack.c.b16 %v356, %v355
    %389 = vmatprep.subr.bf16.mxu0 0
    %390 = vmatpush1.bf16.msra.mxu0 %v357
    %391 = vmatprep.subr.bf16.mxu0 0
    %392 = vmatpush1.bf16.msra.mxu0 %v358
    %393 = vmatprep.subr.bf16.mxu0 0
    %394 = vmatpush1.bf16.msra.mxu0 %v359
    %395 = vmatprep.subr.bf16.mxu0 0
    %396 = vmatpush1.bf16.msra.mxu0 %v360
    %397 = vmatprep.subr.bf16.mxu0 0
    %398 = vmatpush1.bf16.msra.mxu0 %v361
    %399 = vmatprep.subr.bf16.mxu0 0
    %400 = vmatpush1.bf16.msra.mxu0 %v362
    %401 = vmatprep.subr.bf16.mxu0 0
    %402 = vmatpush1.bf16.msra.mxu0 %v363
    %403 = vmatprep.subr.bf16.mxu0 0
    %404 = vmatpush1.bf16.msra.mxu0 %v364
    %405 = vmatprep.subr.bf16.mxu0 0
    %406 = vmatpush1.bf16.msra.mxu0 %v365
    %407 = vmatprep.subr.bf16.mxu0 0
    %408 = vmatpush1.bf16.msra.mxu0 %v366
    %409 = vmatprep.subr.bf16.mxu0 0
    %410 = vmatpush1.bf16.msra.mxu0 %v367
    %411 = vmatprep.subr.bf16.mxu0 0
    %412 = vmatpush1.bf16.msra.mxu0 %v368
    %413 = vmatprep.subr.bf16.mxu0 0
    %414 = vmatpush1.bf16.msra.mxu0 %v369
    %415 = vmatprep.subr.bf16.mxu0 0
    %416 = vmatpush1.bf16.msra.mxu0 %v370
    %417 = vmatprep.subr.bf16.mxu0 0
    %418 = vmatpush1.bf16.msra.mxu0 %v371
    %419 = vmatprep.subr.bf16.mxu0 0
    %420 = vmatpush1.bf16.msra.mxu0 %v372
    %421 = vmatprep.mubr.bf16.mxu0 %v252
    %422 = vmatmul.mubr.bf16.gmra.mrb[0].mxu0 %v251
    %v423 = vpop.f32.mrb[0].mxu0
    %v424 = vadd.f32 %v291, %v423
    %v425 = vpop.f32.mrb[0].mxu0
    %v426 = vpop.f32.mrb[0].mxu0
    %v427 = vpop.f32.mrb[0].mxu0
    %428 = vdwg.mxu0
    %v429 = vmax.f32 %v424, 0.0
    %v430 = vpack.c.bf16 %v429, %v429
    %v431 = vld [vmem:[#allocation9] sm:$0xf]
    %v432 = vld [vmem:[#allocation9 + $0x4] sm:$0xf]
    %v433 = vld [vmem:[#allocation9 + $0x8] sm:$0xf]
    %v434 = vld [vmem:[#allocation9 + $0xc] sm:$0xf]
    %v435 = vld [vmem:[#allocation9 + $0x10] sm:$0xf]
    %v436 = vld [vmem:[#allocation9 + $0x14] sm:$0xf]
    %v437 = vld [vmem:[#allocation9 + $0x18] sm:$0xf]
    %v438 = vld [vmem:[#allocation9 + $0x1c] sm:$0xf]
    %v439 = vld [vmem:[#allocation9 + $0x20] sm:$0xf]
    %v440 = vld [vmem:[#allocation9 + $0x24] sm:$0xf]
    %v441 = vld [vmem:[#allocation9 + $0x28] sm:$0xf]
    %v442 = vld [vmem:[#allocation9 + $0x2c] sm:$0xf]
    %v443 = vld [vmem:[#allocation9 + $0x30] sm:$0xf]
    %v444 = vld [vmem:[#allocation9 + $0x34] sm:$0xf]
    %v445 = vld [vmem:[#allocation9 + $0x38] sm:$0xf]
    %v446 = vld [vmem:[#allocation9 + $0x3c] sm:$0xf]
    %v447 = vld [vmem:[#allocation11] sm:$0xf]
    %v448 = vld [vmem:[#allocation11 + $0x4] sm:$0xf]
    %v449 = vld [vmem:[#allocation11 + $0x8] sm:$0xf]
    %v450 = vld [vmem:[#allocation11 + $0xc] sm:$0xf]
    %v451 = vld [vmem:[#allocation11 + $0x10] sm:$0xf]
    %v452 = vld [vmem:[#allocation11 + $0x14] sm:$0xf]
    %v453 = vld [vmem:[#allocation11 + $0x18] sm:$0xf]
    %v454 = vld [vmem:[#allocation11 + $0x1c] sm:$0xf]
    %v455 = vld [vmem:[#allocation11 + $0x20] sm:$0xf]
    %v456 = vld [vmem:[#allocation11 + $0x24] sm:$0xf]
    %v457 = vld [vmem:[#allocation11 + $0x28] sm:$0xf]
    %v458 = vld [vmem:[#allocation11 + $0x2c] sm:$0xf]
    %v459 = vld [vmem:[#allocation11 + $0x30] sm:$0xf]
    %v460 = vld [vmem:[#allocation11 + $0x34] sm:$0xf]
    %v461 = vld [vmem:[#allocation11 + $0x38] sm:$0xf]
    %v462 = vld [vmem:[#allocation11 + $0x3c] sm:$0xf]
    %v479 = vunpack.c.l.b16 %v447
    %v480 = vunpack.c.l.b16 %v448
    %v481 = vunpack.c.l.b16 %v449
    %v482 = vunpack.c.l.b16 %v450
    %v483 = vunpack.c.l.b16 %v451
    %v484 = vunpack.c.l.b16 %v452
    %v485 = vunpack.c.l.b16 %v453
    %v486 = vunpack.c.l.b16 %v454
    %v487 = vunpack.c.l.b16 %v455
    %v488 = vunpack.c.l.b16 %v456
    %v489 = vunpack.c.l.b16 %v457
    %v490 = vunpack.c.l.b16 %v458
    %v491 = vunpack.c.l.b16 %v459
    %v492 = vunpack.c.l.b16 %v460
    %v493 = vunpack.c.l.b16 %v461
    %v494 = vunpack.c.l.b16 %v462
    %v495 = vpack.c.b16 %v480, %v479
    %v496 = vpack.c.b16 %v482, %v481
    %v497 = vpack.c.b16 %v484, %v483
    %v498 = vpack.c.b16 %v486, %v485
    %v499 = vpack.c.b16 %v488, %v487
    %v500 = vpack.c.b16 %v490, %v489
    %v501 = vpack.c.b16 %v492, %v491
    %v502 = vpack.c.b16 %v494, %v493
    %511 = vmatprep.subr.bf16.mxu0 0
    %512 = vmatpush1.bf16.msra.mxu0 %v495
    %513 = vmatprep.subr.bf16.mxu0 0
    %514 = vmatpush1.bf16.msra.mxu0 %v496
    %515 = vmatprep.subr.bf16.mxu0 0
    %516 = vmatpush1.bf16.msra.mxu0 %v497
    %517 = vmatprep.subr.bf16.mxu0 0
    %518 = vmatpush1.bf16.msra.mxu0 %v498
    %519 = vmatprep.subr.bf16.mxu0 0
    %520 = vmatpush1.bf16.msra.mxu0 %v499
    %521 = vmatprep.subr.bf16.mxu0 0
    %522 = vmatpush1.bf16.msra.mxu0 %v500
    %523 = vmatprep.subr.bf16.mxu0 0
    %524 = vmatpush1.bf16.msra.mxu0 %v501
    %525 = vmatprep.subr.bf16.mxu0 0
    %526 = vmatpush1.bf16.msra.mxu0 %v502
    %527 = vmatprep.subr.bf16.mxu0 0
    %528 = vmatpush1.bf16.msra.mxu0 0
    %529 = vmatprep.subr.bf16.mxu0 0
    %530 = vmatpush1.bf16.msra.mxu0 0
    %531 = vmatprep.subr.bf16.mxu0 0
    %532 = vmatpush1.bf16.msra.mxu0 0
    %533 = vmatprep.subr.bf16.mxu0 0
    %534 = vmatpush1.bf16.msra.mxu0 0
    %535 = vmatprep.subr.bf16.mxu0 0
    %536 = vmatpush1.bf16.msra.mxu0 0
    %537 = vmatprep.subr.bf16.mxu0 0
    %538 = vmatpush1.bf16.msra.mxu0 0
    %539 = vmatprep.subr.bf16.mxu0 0
    %540 = vmatpush1.bf16.msra.mxu0 0
    %541 = vmatprep.subr.bf16.mxu0 0
    %542 = vmatpush1.bf16.msra.mxu0 0
    %543 = vmatprep.mubr.bf16.mxu0 0
    %544 = vmatmul.mubr.bf16.gmra.mrb[0].mxu0 %v253
    %v545 = vpop.f32.mrb[0].mxu0
    %v546 = vadd.f32 0.0, %v545
    %v547 = vpop.f32.mrb[0].mxu0
    %v548 = vpop.f32.mrb[0].mxu0
    %v549 = vpop.f32.mrb[0].mxu0
    %550 = vdwg.mxu0
    %v567 = vunpack.c.l.b16 %v431
    %v568 = vunpack.c.l.b16 %v432
    %v569 = vunpack.c.l.b16 %v433
    %v570 = vunpack.c.l.b16 %v434
    %v571 = vunpack.c.l.b16 %v435
    %v572 = vunpack.c.l.b16 %v436
    %v573 = vunpack.c.l.b16 %v437
    %v574 = vunpack.c.l.b16 %v438
    %v575 = vunpack.c.l.b16 %v439
    %v576 = vunpack.c.l.b16 %v440
    %v577 = vunpack.c.l.b16 %v441
    %v578 = vunpack.c.l.b16 %v442
    %v579 = vunpack.c.l.b16 %v443
    %v580 = vunpack.c.l.b16 %v444
    %v581 = vunpack.c.l.b16 %v445
    %v582 = vunpack.c.l.b16 %v446
    %v583 = vpack.c.b16 %v568, %v567
    %v584 = vpack.c.b16 %v570, %v569
    %v585 = vpack.c.b16 %v572, %v571
    %v586 = vpack.c.b16 %v574, %v573
    %v587 = vpack.c.b16 %v576, %v575
    %v588 = vpack.c.b16 %v578, %v577
    %v589 = vpack.c.b16 %v580, %v579
    %v590 = vpack.c.b16 %v582, %v581
    %599 = vmatprep.subr.bf16.mxu0 0
    %600 = vmatpush1.bf16.msra.mxu0 %v583
    %601 = vmatprep.subr.bf16.mxu0 0
    %602 = vmatpush1.bf16.msra.mxu0 %v584
    %603 = vmatprep.subr.bf16.mxu0 0
    %604 = vmatpush1.bf16.msra.mxu0 %v585
    %605 = vmatprep.subr.bf16.mxu0 0
    %606 = vmatpush1.bf16.msra.mxu0 %v586
    %607 = vmatprep.subr.bf16.mxu0 0
    %608 = vmatpush1.bf16.msra.mxu0 %v587
    %609 = vmatprep.subr.bf16.mxu0 0
    %610 = vmatpush1.bf16.msra.mxu0 %v588
    %611 = vmatprep.subr.bf16.mxu0 0
    %612 = vmatpush1.bf16.msra.mxu0 %v589
    %613 = vmatprep.subr.bf16.mxu0 0
    %614 = vmatpush1.bf16.msra.mxu0 %v590
    %615 = vmatprep.subr.bf16.mxu0 0
    %616 = vmatpush1.bf16.msra.mxu0 0
    %617 = vmatprep.subr.bf16.mxu0 0
    %618 = vmatpush1.bf16.msra.mxu0 0
    %619 = vmatprep.subr.bf16.mxu0 0
    %620 = vmatpush1.bf16.msra.mxu0 0
    %621 = vmatprep.subr.bf16.mxu0 0
    %622 = vmatpush1.bf16.msra.mxu0 0
    %623 = vmatprep.subr.bf16.mxu0 0
    %624 = vmatpush1.bf16.msra.mxu0 0
    %625 = vmatprep.subr.bf16.mxu0 0
    %626 = vmatpush1.bf16.msra.mxu0 0
    %627 = vmatprep.subr.bf16.mxu0 0
    %628 = vmatpush1.bf16.msra.mxu0 0
    %629 = vmatprep.subr.bf16.mxu0 0
    %630 = vmatpush1.bf16.msra.mxu0 0
    %631 = vmatprep.mubr.bf16.mxu0 0
    %632 = vmatmul.mubr.bf16.gmra.mrb[0].mxu0 %v430
    %v633 = vpop.f32.mrb[0].mxu0
    %v634 = vadd.f32 %v546, %v633
    %v635 = vpop.f32.mrb[0].mxu0
    %v636 = vpop.f32.mrb[0].mxu0
    %v637 = vpop.f32.mrb[0].mxu0
    %638 = vdwg.mxu0
    %v639 = vld [vmem:[%s7] sm:$0x1]
    %v641 = vlaneseq
    %v642 = vshrl.u32 %v641, 7
    %v643 = vsub.s32 0, %v642
    %v644 = vrot.slane %v639, %v643
    %v646 = vadd.f32 %v634, %v644
    %v647 = vmax.f32 %v646, 0.0
    %v648 = vpack.c.bf16 %v647, %v647
    %v649 = vld [vmem:[%s8] sm:$0x1]
    %v650 = vld [vmem:[#allocation2] sm:$0x1]
    %652 = vset.pattern.permute.xlu0 0
    %653 = vperm.xlu0 %652, %v650
    %v654 = vpop.permute.xlu0 %653
    %v656 = vlaneseq
    %v657 = vshrl.u32 %v656, 7
    %v658 = vsub.s32 0, %v657
    %v659 = vrot.slane %v654, %v658
    %660 = vmatprep.subr.bf16.mxu0 0
    %661 = vmatpush1.bf16.xpose.msra.mxu0 %v648
    %662 = vmatprep.subr.bf16.mxu0 0
    %663 = vmatpush1.bf16.xpose.msra.mxu0 0
    %664 = vmatprep.subr.bf16.mxu0 0
    %665 = vmatpush1.bf16.xpose.msra.mxu0 0
    %666 = vmatprep.subr.bf16.mxu0 0
    %667 = vmatpush1.bf16.xpose.msra.mxu0 0
    %668 = vmatprep.subr.bf16.mxu0 0
    %669 = vmatpush1.bf16.xpose.msra.mxu0 0
    %670 = vmatprep.subr.bf16.mxu0 0
    %671 = vmatpush1.bf16.xpose.msra.mxu0 0
    %672 = vmatprep.subr.bf16.mxu0 0
    %673 = vmatpush1.bf16.xpose.msra.mxu0 0
    %674 = vmatprep.subr.bf16.mxu0 0
    %675 = vmatpush1.bf16.xpose.msra.mxu0 0
    %676 = vmatprep.subr.bf16.mxu0 0
    %677 = vmatpush1.bf16.xpose.msra.mxu0 0
    %678 = vmatprep.subr.bf16.mxu0 0
    %679 = vmatpush1.bf16.xpose.msra.mxu0 0
    %680 = vmatprep.subr.bf16.mxu0 0
    %681 = vmatpush1.bf16.xpose.msra.mxu0 0
    %682 = vmatprep.subr.bf16.mxu0 0
    %683 = vmatpush1.bf16.xpose.msra.mxu0 0
    %684 = vmatprep.subr.bf16.mxu0 0
    %685 = vmatpush1.bf16.xpose.msra.mxu0 0
    %686 = vmatprep.subr.bf16.mxu0 0
    %687 = vmatpush1.bf16.xpose.msra.mxu0 0
    %688 = vmatprep.subr.bf16.mxu0 0
    %689 = vmatpush1.bf16.xpose.msra.mxu0 0
    %690 = vmatprep.subr.bf16.mxu0 0
    %691 = vmatpush1.bf16.xpose.msra.mxu0 0
    %692 = vmatprep.mubr.bf16.mxu0 0
    %693 = vmatmul.mubr.bf16.gmra.mrb[0].mxu0 %v649
    %v694 = vpop.f32.mrb[0].mxu0
    %v695 = vadd.f32 %v659, %v694
    %v696 = vpop.f32.mrb[0].mxu0
    %v697 = vpop.f32.mrb[0].mxu0
    %v698 = vpop.f32.mrb[0].mxu0
    %699 = vdwg.mxu0
    %vm700 = vcmask 57344
    %701 = vst.msk [vmem:[#allocation12] sm:$0x1] %vm700, %v695
    // Predicated region
    $region62: #{tpu_custom_call.1} parent=1 // pred_check
      _
    $region63: #{tpu_custom_call.1} parent=1 // pred_check_branch
      %703 = sbr.rel (0) target = $region65
    $region64: #{tpu_custom_call.1} parent=1 // pred_region
      %s705 = ssub.s32 16, 16
      %706 = vsyncadd [#allocation5], %s705
      %s708 = sshll.u32 [#allocation12], 4
      %s709 = int_to_ptr.vmem [resolvable:$true] %s708
      %711 = dma.vmem_to_hbm [thread:$0]  %s709, 16, %s10, [#allocation5]
    $region65: #{tpu_custom_call.1} parent=1 // pred_fallthru
      _
    // Predicated region
    $region66: #{tpu_custom_call.1} parent=1 // pred_check
      _
    $region67: #{tpu_custom_call.1} parent=1 // pred_check_branch
      %713 = sbr.rel (0) target = $region69
    $region68: #{tpu_custom_call.1} parent=1 // pred_region
      %714 = dma.done [#allocation5], 16
    $region69: #{tpu_custom_call.1} parent=1 // pred_fallthru
      _
    %715 = vsyncpa [#allocation4], 1
    %716 = vsyncpa [#allocation7], 1
    %717 = vsyncpa [#allocation10], 1
    %718 = vsyncpa [#allocation5], 1

</llo_original>
